<compile_context>
chip_gen: v7x
topology: tpu7x:2x2x1
jax: 0.10.0
libtpu: 0.0.40
codegen_flags: <defaults>
</compile_context>

<pallas_src>
import jax
import jax.numpy as jnp
from jax.experimental import pallas as pl
from jax.experimental.pallas import tpu as pltpu

TILE_B_MAX = 8192   # batch columns per grid step (lane dim; multiple of 128)


def _round_up(x, m):
    return ((x + m - 1) // m) * m


def _cdiv(a, b):
    return (a + b - 1) // b


def _mlp_kernel(x_ref, w0_ref, b0_ref, w1_ref, b1_ref, w2_ref, b2_ref, o_ref):
    """All tensors are in transposed (features, batch) layout -> lane dense."""
    cdt = w0_ref.dtype
    xT = x_ref[...]                                            # (F, tile_b)

    # dense0 + ReLU : h0^T = relu(W0^T @ x^T + b0)
    h = jnp.dot(w0_ref[...], xT, preferred_element_type=jnp.float32) + b0_ref[...]
    h = jnp.maximum(h, 0.0).astype(cdt)                        # (Hp, tile_b)

    # Dropout(p=0.1): identity in eval/inference mode.
    # TODO(synk): training-mode dropout would use pltpu.prng_seed +
    # pltpu.stateful_bernoulli and a 1/(1-p) rescale.

    # dense1 + ReLU : h1^T = relu(W1^T @ h0^T + b1)
    h = jnp.dot(w1_ref[...], h, preferred_element_type=jnp.float32) + b1_ref[...]
    h = jnp.maximum(h, 0.0).astype(cdt)                        # (Hp, tile_b)

    # output layer: logits^T (sublane-padded to 8 rows; rows >=2 are zero/unused)
    logits = jnp.dot(w2_ref[...], h, preferred_element_type=jnp.float32) + b2_ref[...]

    # 2-class softmax without any cross-lane reduction:
    #   p1 = sigmoid(l1 - l0) = 1 / (1 + exp(l0 - l1)),  p0 = 1 - p1
    d = logits[1:2, :] - logits[0:1, :]                        # (1, tile_b)
    p1 = pl.reciprocal(1.0 + jnp.exp(-d), approx=False)        # EUP exp + recip
    p0 = 1.0 - p1
    o_ref[...] = jnp.concatenate([p0, p1], axis=0).astype(o_ref.dtype)  # (2, tile_b)


def prepare_params(params, compute_dtype=jnp.bfloat16):
    """One-time re-layout of the PyTorch-equivalent params into kernel layout.

    Weights are transposed to (out, in) for the W^T @ x^T formulation, cast to
    the compute dtype, and zero-padded on the sublane (output-feature) axis to
    a multiple of 8. Padding is exact (zeros), so results are unchanged.
    """
    F, H = params["W0"].shape
    n_out = params["W2"].shape[1]
    assert n_out == 2, "kernel specializes the 2-class softmax head"
    Hp = _round_up(H, 8)
    Op = 8  # padded output rows (rows >= n_out are exactly zero and ignored)

    def padT(W, rows, cols):
        out = jnp.zeros((rows, cols), compute_dtype)
        return out.at[: W.shape[1], : W.shape[0]].set(W.T.astype(compute_dtype))

    def padb(b, rows):
        out = jnp.zeros((rows, 1), jnp.float32)
        return out.at[: b.shape[1], 0].set(b[0].astype(jnp.float32))

    return {
        "W0T": padT(params["W0"], Hp, F),   # (Hp, F)
        "b0T": padb(params["b0"], Hp),      # (Hp, 1)  f32 (added post-accumulate)
        "W1T": padT(params["W1"], Hp, Hp),  # (Hp, Hp)
        "b1T": padb(params["b1"], Hp),      # (Hp, 1)
        "W2T": padT(params["W2"], Op, Hp),  # (Op, Hp)
        "b2T": padb(params["b2"], Op),      # (Op, 1)
    }


def _choose_tile(B, tile_b):
    if tile_b is None:
        tile_b = TILE_B_MAX
    if B <= tile_b:
        return B, 1                                   # single block == full lane dim
    tile_b = _round_up(min(tile_b, B), 128)           # lane dim must be 128-multiple
    nt = _cdiv(B, tile_b)
    if nt % 2 == 1:                                   # prefer even grid for v7x's 2 TCs
        cand = _round_up(_cdiv(B, nt + 1), 128)
        if cand >= 128 and _cdiv(B, cand) % 2 == 0:
            tile_b = cand
            nt = _cdiv(B, cand)
    return tile_b, nt


def my_neural_net_forward(x, kparams, tile_b=None):
    """x: [B, 20] float32; kparams: output of prepare_params(). Returns [B, 2]."""
    B, F = x.shape
    cdt = kparams["W0T"].dtype
    Hp = kparams["W0T"].shape[0]
    Op = kparams["W2T"].shape[0]

    # Transposed, (optionally) bf16 input: lane-dense inside the kernel and
    # half the HBM read when cdt == bf16.
    xT = x.T.astype(cdt)                               # (F, B)

    tile_b, nt = _choose_tile(B, tile_b)

    itemsize = jnp.dtype(cdt).itemsize
    param_bytes = sum(int(v.size) * jnp.dtype(v.dtype).itemsize for v in kparams.values())
    cost = pl.CostEstimate(
        flops=int(2 * B * (F * Hp + Hp * Hp + Hp * Op)),
        transcendentals=int(B),
        bytes_accessed=int(B * F * itemsize + 2 * B * 4 + param_bytes),
    )

    yT = pl.pallas_call(
        _mlp_kernel,
        out_shape=jax.ShapeDtypeStruct((2, B), jnp.float32),
        grid=(nt,),
        in_specs=[
            pl.BlockSpec((F, tile_b), lambda i: (0, i)),   # x^T: streamed per tile
            pl.BlockSpec((Hp, F), lambda i: (0, 0)),       # W0^T: resident
            pl.BlockSpec((Hp, 1), lambda i: (0, 0)),       # b0: resident
            pl.BlockSpec((Hp, Hp), lambda i: (0, 0)),      # W1^T: resident
            pl.BlockSpec((Hp, 1), lambda i: (0, 0)),       # b1: resident
            pl.BlockSpec((Op, Hp), lambda i: (0, 0)),      # W2^T: resident
            pl.BlockSpec((Op, 1), lambda i: (0, 0)),       # b2: resident
        ],
        out_specs=pl.BlockSpec((2, tile_b), lambda i: (0, i)),  # lane-dense output
        compiler_params=pltpu.CompilerParams(
            dimension_semantics=("parallel",),   # megacore split on v7x
            vmem_limit_bytes=32 * 1024 * 1024,   # footprint ~1.5 MiB; safe on v5e-v7x
        ),
        cost_estimate=cost,
    )(xT, kparams["W0T"], kparams["b0T"], kparams["W1T"], kparams["b1T"],
      kparams["W2T"], kparams["b2T"])

    return yT.T  # (B, 2); tiny (2, B) transpose in the wrapper


def my_neural_net_ref(x, params):
    """Pure-JAX reference of the PyTorch forward (eval mode), f32."""
    h = jnp.maximum(x @ params["W0"] + params["b0"], 0.0)
    h = jnp.maximum(h @ params["W1"] + params["b1"], 0.0)
    logits = h @ params["W2"] + params["b2"]
    return jax.nn.softmax(logits, axis=-1)


def init_params(key, in_features=20, num_neurons=10, out_features=2):
    """Deterministic init mimicking nn.Linear's U(-1/sqrt(fan_in), 1/sqrt(fan_in))."""
    ks = jax.random.split(key, 6)

    def linear(kw, kb, fan_in, fan_out):
        bound = 1.0 / jnp.sqrt(fan_in)
        W = jax.random.uniform(kw, (fan_in, fan_out), jnp.float32, -bound, bound)
        b = jax.random.uniform(kb, (1, fan_out), jnp.float32, -bound, bound)
        return W, b

    W0, b0 = linear(ks[0], ks[1], in_features, num_neurons)
    W1, b1 = linear(ks[2], ks[3], num_neurons, num_neurons)
    W2, b2 = linear(ks[4], ks[5], num_neurons, out_features)
    return {"W0": W0, "b0": b0, "W1": W1, "b1": b1, "W2": W2, "b2": b2}


if __name__ == "__main__":
    key = jax.random.PRNGKey(0)
    k_x, k_x2, k_p = jax.random.split(key, 3)

    F = 20  # matches nn.Linear(20, num_neurons)
    params = init_params(k_p, in_features=F, num_neurons=10, out_features=2)

    # --- f32 path, small batch, single grid step: strict numerics check. ---
    kparams32 = prepare_params(params, compute_dtype=jnp.float32)
    B = 8
    x = jax.random.normal(k_x, (B, F), dtype=jnp.float32)
    y = jax.block_until_ready(my_neural_net_forward(x, kparams32))
    y_ref = my_neural_net_ref(x, params)
    assert y.shape == (B, 2)
    assert jnp.allclose(y, y_ref, atol=1e-5, rtol=1e-5)
    assert jnp.allclose(jnp.sum(y, axis=-1), 1.0, atol=1e-5)

    # --- Larger, non-multiple batch with a forced small tile: exercises the
    #     multi-step grid and the ragged final block (no jnp.pad anywhere). ---
    B2 = 2050
    x2 = jax.random.normal(k_x2, (B2, F), dtype=jnp.float32)
    y2 = jax.block_until_ready(my_neural_net_forward(x2, kparams32, tile_b=256))
    y2_ref = my_neural_net_ref(x2, params)
    assert y2.shape == (B2, 2)
    assert jnp.allclose(y2, y2_ref, atol=1e-5, rtol=1e-5)

    # --- bf16 streamed-input/weights path (perf-review item): f32 MXU accum,
    #     looser tolerance purely from bf16 input/weight quantization. ---
    kparams16 = prepare_params(params, compute_dtype=jnp.bfloat16)
    y3 = jax.block_until_ready(my_neural_net_forward(x2, kparams16))
    assert y3.shape == (B2, 2)
    assert jnp.allclose(y3, y2_ref, atol=2e-2)
    assert jnp.allclose(jnp.sum(y3, axis=-1), 1.0, atol=1e-5)

    print("KERNEL_OK")
</pallas_src>

<mosaic_0001>
module attributes {stable_mosaic.version = 11 : i64} {
  func.func @_mlp_kernel(%arg0: i32, %arg1: memref<20x8xf32, #tpu.memory_space<vmem>>, %arg2: memref<16x20xf32, #tpu.memory_space<vmem>>, %arg3: memref<16x1xf32, #tpu.memory_space<vmem>>, %arg4: memref<16x16xf32, #tpu.memory_space<vmem>>, %arg5: memref<16x1xf32, #tpu.memory_space<vmem>>, %arg6: memref<8x16xf32, #tpu.memory_space<vmem>>, %arg7: memref<8x1xf32, #tpu.memory_space<vmem>>, %arg8: memref<2x8xf32, #tpu.memory_space<vmem>>) attributes {dimension_semantics = [#tpu.dimension_semantics<parallel>], iteration_bounds = array<i64: 1>, scalar_prefetch = 0 : i64, scratch_operands = 0 : i64, tpu.core_type = #tpu.core_type<tc>, window_params = [{transform_indices = @transform_0, window_bounds = array<i64: 20, 8>}, {pipeline_mode = #tpu.pipeline_mode<synchronous>, transform_indices = @transform_1, window_bounds = array<i64: 16, 20>}, {pipeline_mode = #tpu.pipeline_mode<synchronous>, transform_indices = @transform_2, window_bounds = array<i64: 16, 1>}, {pipeline_mode = #tpu.pipeline_mode<synchronous>, transform_indices = @transform_3, window_bounds = array<i64: 16, 16>}, {pipeline_mode = #tpu.pipeline_mode<synchronous>, transform_indices = @transform_4, window_bounds = array<i64: 16, 1>}, {pipeline_mode = #tpu.pipeline_mode<synchronous>, transform_indices = @transform_5, window_bounds = array<i64: 8, 16>}, {pipeline_mode = #tpu.pipeline_mode<synchronous>, transform_indices = @transform_6, window_bounds = array<i64: 8, 1>}, {transform_indices = @transform_7, window_bounds = array<i64: 2, 8>}]} {
    %c0 = arith.constant 0 : index
    %c0_0 = arith.constant 0 : index
    %0 = vector.load %arg1[%c0, %c0_0] : memref<20x8xf32, #tpu.memory_space<vmem>>, vector<20x8xf32>
    %c0_1 = arith.constant 0 : index
    %c0_2 = arith.constant 0 : index
    %1 = vector.load %arg2[%c0_1, %c0_2] : memref<16x20xf32, #tpu.memory_space<vmem>>, vector<16x20xf32>
    %cst = arith.constant dense<0.000000e+00> : vector<16x8xf32>
    %2 = tpu.matmul %1, %0, %cst {dimension_numbers = #tpu.dot_dimension_numbers<[1], [0], [0], [1], [0, 0, 1, 1], [], []>} : vector<16x20xf32>, vector<20x8xf32>, vector<16x8xf32> -> vector<16x8xf32>
    %c0_3 = arith.constant 0 : index
    %c0_4 = arith.constant 0 : index
    %3 = vector.load %arg3[%c0_3, %c0_4] : memref<16x1xf32, #tpu.memory_space<vmem>>, vector<16x1xf32>
    %4 = vector.broadcast %3 : vector<16x1xf32> to vector<16x8xf32>
    %5 = arith.addf %2, %4 : vector<16x8xf32>
    %cst_5 = arith.constant 0.000000e+00 : f32
    %6 = vector.broadcast %cst_5 : f32 to vector<16x8xf32>
    %7 = arith.maximumf %5, %6 : vector<16x8xf32>
    %c0_6 = arith.constant 0 : index
    %c0_7 = arith.constant 0 : index
    %8 = vector.load %arg4[%c0_6, %c0_7] : memref<16x16xf32, #tpu.memory_space<vmem>>, vector<16x16xf32>
    %cst_8 = arith.constant dense<0.000000e+00> : vector<16x8xf32>
    %9 = tpu.matmul %8, %7, %cst_8 {dimension_numbers = #tpu.dot_dimension_numbers<[1], [0], [0], [1], [0, 0, 1, 1], [], []>} : vector<16x16xf32>, vector<16x8xf32>, vector<16x8xf32> -> vector<16x8xf32>
    %c0_9 = arith.constant 0 : index
    %c0_10 = arith.constant 0 : index
    %10 = vector.load %arg5[%c0_9, %c0_10] : memref<16x1xf32, #tpu.memory_space<vmem>>, vector<16x1xf32>
    %11 = vector.broadcast %10 : vector<16x1xf32> to vector<16x8xf32>
    %12 = arith.addf %9, %11 : vector<16x8xf32>
    %cst_11 = arith.constant 0.000000e+00 : f32
    %13 = vector.broadcast %cst_11 : f32 to vector<16x8xf32>
    %14 = arith.maximumf %12, %13 : vector<16x8xf32>
    %c0_12 = arith.constant 0 : index
    %c0_13 = arith.constant 0 : index
    %15 = vector.load %arg6[%c0_12, %c0_13] : memref<8x16xf32, #tpu.memory_space<vmem>>, vector<8x16xf32>
    %cst_14 = arith.constant dense<0.000000e+00> : vector<8x8xf32>
    %16 = tpu.matmul %15, %14, %cst_14 {dimension_numbers = #tpu.dot_dimension_numbers<[1], [0], [0], [1], [0, 0, 1, 1], [], []>} : vector<8x16xf32>, vector<16x8xf32>, vector<8x8xf32> -> vector<8x8xf32>
    %c0_15 = arith.constant 0 : index
    %c0_16 = arith.constant 0 : index
    %17 = vector.load %arg7[%c0_15, %c0_16] : memref<8x1xf32, #tpu.memory_space<vmem>>, vector<8x1xf32>
    %18 = vector.broadcast %17 : vector<8x1xf32> to vector<8x8xf32>
    %19 = arith.addf %16, %18 : vector<8x8xf32>
    %20 = vector.extract_strided_slice %19 {offsets = [1, 0], sizes = [1, 8], strides = [1, 1]} : vector<8x8xf32> to vector<1x8xf32>
    %21 = vector.extract_strided_slice %19 {offsets = [0, 0], sizes = [1, 8], strides = [1, 1]} : vector<8x8xf32> to vector<1x8xf32>
    %22 = arith.subf %20, %21 : vector<1x8xf32>
    %cst_17 = arith.constant 0.000000e+00 : f32
    %23 = vector.broadcast %cst_17 : f32 to vector<1x8xf32>
    %24 = arith.subf %23, %22 : vector<1x8xf32>
    %25 = math.exp %24 : vector<1x8xf32>
    %cst_18 = arith.constant 1.000000e+00 : f32
    %26 = vector.broadcast %cst_18 : f32 to vector<1x8xf32>
    %27 = arith.addf %26, %25 : vector<1x8xf32>
    %28 = tpu.reciprocal %27 : vector<1x8xf32> -> vector<1x8xf32>
    %cst_19 = arith.constant 1.000000e+00 : f32
    %29 = vector.broadcast %cst_19 : f32 to vector<1x8xf32>
    %30 = arith.subf %29, %28 : vector<1x8xf32>
    %31 = tpu.concatenate %30, %28 in 0 : vector<1x8xf32>, vector<1x8xf32> -> vector<2x8xf32>
    %c0_20 = arith.constant 0 : index
    %c0_21 = arith.constant 0 : index
    %32 = vector.load %arg8[%c0_20, %c0_21] : memref<2x8xf32, #tpu.memory_space<vmem>>, vector<2x8xf32>
    tpu.vector_store %arg8[%c0_20, %c0_21], %31 {strides = array<i32>} : memref<2x8xf32, #tpu.memory_space<vmem>>, vector<2x8xf32>,
    return
  }
  func.func @transform_0(%arg0: i32) -> (i32, i32) {
    %c0_i32 = arith.constant 0 : i32
    %c0_i32_0 = arith.constant 0 : i32
    return %c0_i32, %arg0 : i32, i32
  }
  func.func @transform_1(%arg0: i32) -> (i32, i32) {
    %c0_i32 = arith.constant 0 : i32
    %c0_i32_0 = arith.constant 0 : i32
    %c0_i32_1 = arith.constant 0 : i32
    return %c0_i32, %c0_i32_0 : i32, i32
  }
  func.func @transform_2(%arg0: i32) -> (i32, i32) {
    %c0_i32 = arith.constant 0 : i32
    %c0_i32_0 = arith.constant 0 : i32
    %c0_i32_1 = arith.constant 0 : i32
    return %c0_i32, %c0_i32_0 : i32, i32
  }
  func.func @transform_3(%arg0: i32) -> (i32, i32) {
    %c0_i32 = arith.constant 0 : i32
    %c0_i32_0 = arith.constant 0 : i32
    %c0_i32_1 = arith.constant 0 : i32
    return %c0_i32, %c0_i32_0 : i32, i32
  }
  func.func @transform_4(%arg0: i32) -> (i32, i32) {
    %c0_i32 = arith.constant 0 : i32
    %c0_i32_0 = arith.constant 0 : i32
    %c0_i32_1 = arith.constant 0 : i32
    return %c0_i32, %c0_i32_0 : i32, i32
  }
  func.func @transform_5(%arg0: i32) -> (i32, i32) {
    %c0_i32 = arith.constant 0 : i32
    %c0_i32_0 = arith.constant 0 : i32
    %c0_i32_1 = arith.constant 0 : i32
    return %c0_i32, %c0_i32_0 : i32, i32
  }
  func.func @transform_6(%arg0: i32) -> (i32, i32) {
    %c0_i32 = arith.constant 0 : i32
    %c0_i32_0 = arith.constant 0 : i32
    %c0_i32_1 = arith.constant 0 : i32
    return %c0_i32, %c0_i32_0 : i32, i32
  }
  func.func @transform_7(%arg0: i32) -> (i32, i32) {
    %c0_i32 = arith.constant 0 : i32
    %c0_i32_0 = arith.constant 0 : i32
    return %c0_i32, %arg0 : i32, i32
  }
}

</mosaic_0001>

<llo_original>
// kernel: tpu_custom_call.1
$region0: #{tpu_custom_call.1}
  #allocation0 [shape = 'u32[]', space=smem, size = 0x4, offset = 0x4, fixed_abs, tag = 'smem constant byte address 0x4 - core index']
  #allocation1 [shape = 'u32[144,128]{1,0:T(1,128)}', space=vmem, size = 0x12000, scoped, tag = 'internal scratch']
  %s0 = inlined_call_operand.vmem [shape: f32[20,8], index: 0, kind: input, shape index: {}]
  %s1 = inlined_call_operand.vmem [shape: f32[16,20], index: 1, kind: input, shape index: {}]
  %s2 = inlined_call_operand.vmem [shape: f32[16,1], index: 2, kind: input, shape index: {}]
  %s3 = inlined_call_operand.vmem [shape: f32[16,16], index: 3, kind: input, shape index: {}]
  %s4 = inlined_call_operand.vmem [shape: f32[16,1], index: 4, kind: input, shape index: {}]
  %s5 = inlined_call_operand.vmem [shape: f32[8,16], index: 5, kind: input, shape index: {}]
  %s6 = inlined_call_operand.vmem [shape: f32[8,1], index: 6, kind: input, shape index: {}]
  %s7 = inlined_call_operand.hbm [shape: f32[2,8], index: 7, kind: output, shape index: {}]
  %s8 = sld [smem:[#allocation0]]
  $region38: #{tpu_custom_call.1} parent=0
    _
  %s10 = ssub.s32 1, %s8
  %s11 = scalar_select 0, %s10, %s8
  $region1: #{tpu_custom_call.1} parent=0
    #allocation2 [shape = 'u8[1024]{0}', space=vmem, size = 0x400, scoped, tag = 'output window, operand 0, single buffered']
    #allocation3 [shape = 's32[1]{0}', space=sflag, size = 0x4, scoped, tag = 'scoped memory for tpu_custom_call.1']
    %12 = vsyncpa [#allocation3], 0
    // Predicated region
    $region2: #{tpu_custom_call.1} parent=1 // pred_check
      _
    $region3: #{tpu_custom_call.1} parent=1 // pred_check_branch
      %14 = sbr.rel (0) target = $region5
    $region4: #{tpu_custom_call.1} parent=1 // pred_region
      _
    $region5: #{tpu_custom_call.1} parent=1 // pred_fallthru
      _
    // Predicated region
    $region6: #{tpu_custom_call.1} parent=1 // pred_check
      _
    $region7: #{tpu_custom_call.1} parent=1 // pred_check_branch
      %16 = sbr.rel (0) target = $region9
    $region8: #{tpu_custom_call.1} parent=1 // pred_region
      _
    $region9: #{tpu_custom_call.1} parent=1 // pred_fallthru
      _
    // Predicated region
    $region10: #{tpu_custom_call.1} parent=1 // pred_check
      _
    $region11: #{tpu_custom_call.1} parent=1 // pred_check_branch
      %18 = sbr.rel (0) target = $region13
    $region12: #{tpu_custom_call.1} parent=1 // pred_region
      _
    $region13: #{tpu_custom_call.1} parent=1 // pred_fallthru
      _
    // Predicated region
    $region14: #{tpu_custom_call.1} parent=1 // pred_check
      _
    $region15: #{tpu_custom_call.1} parent=1 // pred_check_branch
      %20 = sbr.rel (0) target = $region17
    $region16: #{tpu_custom_call.1} parent=1 // pred_region
      _
    $region17: #{tpu_custom_call.1} parent=1 // pred_fallthru
      _
    // Predicated region
    $region18: #{tpu_custom_call.1} parent=1 // pred_check
      _
    $region19: #{tpu_custom_call.1} parent=1 // pred_check_branch
      %22 = sbr.rel (0) target = $region21
    $region20: #{tpu_custom_call.1} parent=1 // pred_region
      _
    $region21: #{tpu_custom_call.1} parent=1 // pred_fallthru
      _
    // Predicated region
    $region22: #{tpu_custom_call.1} parent=1 // pred_check
      _
    $region23: #{tpu_custom_call.1} parent=1 // pred_check_branch
      %24 = sbr.rel (0) target = $region25
    $region24: #{tpu_custom_call.1} parent=1 // pred_region
      _
    $region25: #{tpu_custom_call.1} parent=1 // pred_fallthru
      _
    // Predicated region
    $region26: #{tpu_custom_call.1} parent=1 // pred_check
      _
    $region27: #{tpu_custom_call.1} parent=1 // pred_check_branch
      %26 = sbr.rel (0) target = $region29
    $region28: #{tpu_custom_call.1} parent=1 // pred_region
      _
    $region29: #{tpu_custom_call.1} parent=1 // pred_fallthru
      _
    %v27 = vld [vmem:[%s0] sm:$0xff]
    %v28 = vld [vmem:[%s0 + $0x8] sm:$0xff]
    %v29 = vld [vmem:[%s0 + $0x10] sm:$0xf]
    %v30 = vld [vmem:[%s1] sm:$0xff]
    %v31 = vld [vmem:[%s1 + $0x8] sm:$0xff]
    %v32 = vld [vmem:[%s2] sm:$0xff]
    %v33 = vld [vmem:[%s2 + $0x8] sm:$0xff]
    %35 = vset.pattern.permute.xlu0 0
    %36 = vperm.xlu0 %35, %v32
    %v37 = vpop.permute.xlu0 %36
    %40 = vset.pattern.permute.xlu0 0
    %41 = vperm.xlu0 %40, %v33
    %v42 = vpop.permute.xlu0 %41
    %vm44 = vcmask 162816
    %v46 = vsel %vm44, %v30, 0
    %v49 = vsel %vm44, %v31, 0
    %vm51 = vcmask 1043456
    %v53 = vsel %vm51, %v29, 0
    %55 = vmatprep.subr.mxu0 0.0
    %56 = vmatpush1.msra.mxu0 %v27
    %57 = vmatprep.subr.mxu0 0.0
    %58 = vmatpush1.msra.mxu0 %v28
    %59 = vmatprep.subr.mxu0 0.0
    %60 = vmatpush1.msra.mxu0 %v53
    %61 = vmatprep.subr.mxu0 0.0
    %62 = vmatpush1.msra.mxu0 0.0
    %63 = vmatprep.subr.mxu0 0.0
    %64 = vmatpush1.msra.mxu0 0.0
    %65 = vmatprep.subr.mxu0 0.0
    %66 = vmatpush1.msra.mxu0 0.0
    %67 = vmatprep.subr.mxu0 0.0
    %68 = vmatpush1.msra.mxu0 0.0
    %69 = vmatprep.subr.mxu0 0.0
    %70 = vmatpush1.msra.mxu0 0.0
    %71 = vmatprep.subr.mxu0 0.0
    %72 = vmatpush1.msra.mxu0 0.0
    %73 = vmatprep.subr.mxu0 0.0
    %74 = vmatpush1.msra.mxu0 0.0
    %75 = vmatprep.subr.mxu0 0.0
    %76 = vmatpush1.msra.mxu0 0.0
    %77 = vmatprep.subr.mxu0 0.0
    %78 = vmatpush1.msra.mxu0 0.0
    %79 = vmatprep.subr.mxu0 0.0
    %80 = vmatpush1.msra.mxu0 0.0
    %81 = vmatprep.subr.mxu0 0.0
    %82 = vmatpush1.msra.mxu0 0.0
    %83 = vmatprep.subr.mxu0 0.0
    %84 = vmatpush1.msra.mxu0 0.0
    %85 = vmatprep.subr.mxu0 0.0
    %86 = vmatpush1.msra.mxu0 0.0
    %87 = vmatprep.subr.mxu0 0.0
    %88 = vmatpush1.msra.mxu0 0.0
    %89 = vmatprep.subr.mxu0 0.0
    %90 = vmatpush1.msra.mxu0 0.0
    %91 = vmatprep.subr.mxu0 0.0
    %92 = vmatpush1.msra.mxu0 0.0
    %93 = vmatprep.subr.mxu0 0.0
    %94 = vmatpush1.msra.mxu0 0.0
    %95 = vmatprep.subr.mxu0 0.0
    %96 = vmatpush1.msra.mxu0 0.0
    %97 = vmatprep.subr.mxu0 0.0
    %98 = vmatpush1.msra.mxu0 0.0
    %99 = vmatprep.subr.mxu0 0.0
    %100 = vmatpush1.msra.mxu0 0.0
    %101 = vmatprep.subr.mxu0 0.0
    %102 = vmatpush1.msra.mxu0 0.0
    %103 = vmatprep.subr.mxu0 0.0
    %104 = vmatpush1.msra.mxu0 0.0
    %105 = vmatprep.subr.mxu0 0.0
    %106 = vmatpush1.msra.mxu0 0.0
    %107 = vmatprep.subr.mxu0 0.0
    %108 = vmatpush1.msra.mxu0 0.0
    %109 = vmatprep.subr.mxu0 0.0
    %110 = vmatpush1.msra.mxu0 0.0
    %111 = vmatprep.subr.mxu0 0.0
    %112 = vmatpush1.msra.mxu0 0.0
    %113 = vmatprep.subr.mxu0 0.0
    %114 = vmatpush1.msra.mxu0 0.0
    %115 = vmatprep.subr.mxu0 0.0
    %116 = vmatpush1.msra.mxu0 0.0
    %117 = vmatprep.subr.mxu0 0.0
    %118 = vmatpush1.msra.mxu0 0.0
    %119 = vmatprep.mubr.f32.mxu0 0.0
    %120 = vmatmul.mubr.f32.gmra.mrb[0].mxu0 %v46
    %v121 = vpop.f32.mrb[0].mxu0
    %v122 = vadd.f32 %v37, %v121
    %v123 = vpop.f32.mrb[0].mxu0
    %124 = vmatprep.mubr.f32.mxu0 0.0
    %125 = vmatmul.mubr.f32.gmra.mrb[0].mxu0 %v49
    %v126 = vpop.f32.mrb[0].mxu0
    %v127 = vadd.f32 %v42, %v126
    %v128 = vpop.f32.mrb[0].mxu0
    %129 = vdwg.mxu0
    %v130 = vmax.f32 %v122, 0.0
    %v131 = vmax.f32 %v127, 0.0
    %v132 = vld [vmem:[%s3] sm:$0xff]
    %v133 = vld [vmem:[%s3 + $0x8] sm:$0xff]
    %v134 = vld [vmem:[%s4] sm:$0xff]
    %v135 = vld [vmem:[%s4 + $0x8] sm:$0xff]
    %137 = vset.pattern.permute.xlu0 0
    %138 = vperm.xlu0 %137, %v134
    %v139 = vpop.permute.xlu0 %138
    %142 = vset.pattern.permute.xlu0 0
    %143 = vperm.xlu0 %142, %v135
    %v144 = vpop.permute.xlu0 %143
    %vm146 = vcmask 130048
    %v148 = vsel %vm146, %v132, 0
    %v151 = vsel %vm146, %v133, 0
    %153 = vmatprep.subr.mxu0 0.0
    %154 = vmatpush1.msra.mxu0 %v130
    %155 = vmatprep.subr.mxu0 0.0
    %156 = vmatpush1.msra.mxu0 %v131
    %157 = vmatprep.subr.mxu0 0.0
    %158 = vmatpush1.msra.mxu0 0.0
    %159 = vmatprep.subr.mxu0 0.0
    %160 = vmatpush1.msra.mxu0 0.0
    %161 = vmatprep.subr.mxu0 0.0
    %162 = vmatpush1.msra.mxu0 0.0
    %163 = vmatprep.subr.mxu0 0.0
    %164 = vmatpush1.msra.mxu0 0.0
    %165 = vmatprep.subr.mxu0 0.0
    %166 = vmatpush1.msra.mxu0 0.0
    %167 = vmatprep.subr.mxu0 0.0
    %168 = vmatpush1.msra.mxu0 0.0
    %169 = vmatprep.subr.mxu0 0.0
    %170 = vmatpush1.msra.mxu0 0.0
    %171 = vmatprep.subr.mxu0 0.0
    %172 = vmatpush1.msra.mxu0 0.0
    %173 = vmatprep.subr.mxu0 0.0
    %174 = vmatpush1.msra.mxu0 0.0
    %175 = vmatprep.subr.mxu0 0.0
    %176 = vmatpush1.msra.mxu0 0.0
    %177 = vmatprep.subr.mxu0 0.0
    %178 = vmatpush1.msra.mxu0 0.0
    %179 = vmatprep.subr.mxu0 0.0
    %180 = vmatpush1.msra.mxu0 0.0
    %181 = vmatprep.subr.mxu0 0.0
    %182 = vmatpush1.msra.mxu0 0.0
    %183 = vmatprep.subr.mxu0 0.0
    %184 = vmatpush1.msra.mxu0 0.0
    %185 = vmatprep.subr.mxu0 0.0
    %186 = vmatpush1.msra.mxu0 0.0
    %187 = vmatprep.subr.mxu0 0.0
    %188 = vmatpush1.msra.mxu0 0.0
    %189 = vmatprep.subr.mxu0 0.0
    %190 = vmatpush1.msra.mxu0 0.0
    %191 = vmatprep.subr.mxu0 0.0
    %192 = vmatpush1.msra.mxu0 0.0
    %193 = vmatprep.subr.mxu0 0.0
    %194 = vmatpush1.msra.mxu0 0.0
    %195 = vmatprep.subr.mxu0 0.0
    %196 = vmatpush1.msra.mxu0 0.0
    %197 = vmatprep.subr.mxu0 0.0
    %198 = vmatpush1.msra.mxu0 0.0
    %199 = vmatprep.subr.mxu0 0.0
    %200 = vmatpush1.msra.mxu0 0.0
    %201 = vmatprep.subr.mxu0 0.0
    %202 = vmatpush1.msra.mxu0 0.0
    %203 = vmatprep.subr.mxu0 0.0
    %204 = vmatpush1.msra.mxu0 0.0
    %205 = vmatprep.subr.mxu0 0.0
    %206 = vmatpush1.msra.mxu0 0.0
    %207 = vmatprep.subr.mxu0 0.0
    %208 = vmatpush1.msra.mxu0 0.0
    %209 = vmatprep.subr.mxu0 0.0
    %210 = vmatpush1.msra.mxu0 0.0
    %211 = vmatprep.subr.mxu0 0.0
    %212 = vmatpush1.msra.mxu0 0.0
    %213 = vmatprep.subr.mxu0 0.0
    %214 = vmatpush1.msra.mxu0 0.0
    %215 = vmatprep.subr.mxu0 0.0
    %216 = vmatpush1.msra.mxu0 0.0
    %217 = vmatprep.mubr.f32.mxu0 0.0
    %218 = vmatmul.mubr.f32.gmra.mrb[0].mxu0 %v148
    %v219 = vpop.f32.mrb[0].mxu0
    %v220 = vadd.f32 %v139, %v219
    %v221 = vpop.f32.mrb[0].mxu0
    %222 = vmatprep.mubr.f32.mxu0 0.0
    %223 = vmatmul.mubr.f32.gmra.mrb[0].mxu0 %v151
    %v224 = vpop.f32.mrb[0].mxu0
    %v225 = vadd.f32 %v144, %v224
    %v226 = vpop.f32.mrb[0].mxu0
    %227 = vdwg.mxu0
    %v228 = vmax.f32 %v220, 0.0
    %v229 = vmax.f32 %v225, 0.0
    %v230 = vld [vmem:[%s5] sm:$0xff]
    %v231 = vld [vmem:[%s6] sm:$0xff]
    %233 = vset.pattern.permute.xlu0 0
    %234 = vperm.xlu0 %233, %v231
    %v235 = vpop.permute.xlu0 %234
    %v238 = vsel %vm146, %v230, 0
    %240 = vmatprep.subr.mxu0 0.0
    %241 = vmatpush1.msra.mxu0 %v228
    %242 = vmatprep.subr.mxu0 0.0
    %243 = vmatpush1.msra.mxu0 %v229
    %244 = vmatprep.subr.mxu0 0.0
    %245 = vmatpush1.msra.mxu0 0.0
    %246 = vmatprep.subr.mxu0 0.0
    %247 = vmatpush1.msra.mxu0 0.0
    %248 = vmatprep.subr.mxu0 0.0
    %249 = vmatpush1.msra.mxu0 0.0
    %250 = vmatprep.subr.mxu0 0.0
    %251 = vmatpush1.msra.mxu0 0.0
    %252 = vmatprep.subr.mxu0 0.0
    %253 = vmatpush1.msra.mxu0 0.0
    %254 = vmatprep.subr.mxu0 0.0
    %255 = vmatpush1.msra.mxu0 0.0
    %256 = vmatprep.subr.mxu0 0.0
    %257 = vmatpush1.msra.mxu0 0.0
    %258 = vmatprep.subr.mxu0 0.0
    %259 = vmatpush1.msra.mxu0 0.0
    %260 = vmatprep.subr.mxu0 0.0
    %261 = vmatpush1.msra.mxu0 0.0
    %262 = vmatprep.subr.mxu0 0.0
    %263 = vmatpush1.msra.mxu0 0.0
    %264 = vmatprep.subr.mxu0 0.0
    %265 = vmatpush1.msra.mxu0 0.0
    %266 = vmatprep.subr.mxu0 0.0
    %267 = vmatpush1.msra.mxu0 0.0
    %268 = vmatprep.subr.mxu0 0.0
    %269 = vmatpush1.msra.mxu0 0.0
    %270 = vmatprep.subr.mxu0 0.0
    %271 = vmatpush1.msra.mxu0 0.0
    %272 = vmatprep.subr.mxu0 0.0
    %273 = vmatpush1.msra.mxu0 0.0
    %274 = vmatprep.subr.mxu0 0.0
    %275 = vmatpush1.msra.mxu0 0.0
    %276 = vmatprep.subr.mxu0 0.0
    %277 = vmatpush1.msra.mxu0 0.0
    %278 = vmatprep.subr.mxu0 0.0
    %279 = vmatpush1.msra.mxu0 0.0
    %280 = vmatprep.subr.mxu0 0.0
    %281 = vmatpush1.msra.mxu0 0.0
    %282 = vmatprep.subr.mxu0 0.0
    %283 = vmatpush1.msra.mxu0 0.0
    %284 = vmatprep.subr.mxu0 0.0
    %285 = vmatpush1.msra.mxu0 0.0
    %286 = vmatprep.subr.mxu0 0.0
    %287 = vmatpush1.msra.mxu0 0.0
    %288 = vmatprep.subr.mxu0 0.0
    %289 = vmatpush1.msra.mxu0 0.0
    %290 = vmatprep.subr.mxu0 0.0
    %291 = vmatpush1.msra.mxu0 0.0
    %292 = vmatprep.subr.mxu0 0.0
    %293 = vmatpush1.msra.mxu0 0.0
    %294 = vmatprep.subr.mxu0 0.0
    %295 = vmatpush1.msra.mxu0 0.0
    %296 = vmatprep.subr.mxu0 0.0
    %297 = vmatpush1.msra.mxu0 0.0
    %298 = vmatprep.subr.mxu0 0.0
    %299 = vmatpush1.msra.mxu0 0.0
    %300 = vmatprep.subr.mxu0 0.0
    %301 = vmatpush1.msra.mxu0 0.0
    %302 = vmatprep.subr.mxu0 0.0
    %303 = vmatpush1.msra.mxu0 0.0
    %304 = vmatprep.mubr.f32.mxu0 0.0
    %305 = vmatmul.mubr.f32.gmra.mrb[0].mxu0 %v238
    %v306 = vpop.f32.mrb[0].mxu0
    %v307 = vadd.f32 %v235, %v306
    %v308 = vpop.f32.mrb[0].mxu0
    %309 = vdwg.mxu0
    %v311 = vrot.slane %v307, 7
    %v313 = vsub.f32 %v307, %v311
    %v314 = vsub.f32 0.0, %v313
    %v315 = vmul.f32 %v314, 1.442695
    %v316 = vpow.pop %v315
    %v317 = vadd.f32 %v316, 1.0
    %v318 = vrcp.pop %v317
    %v319 = vsub.f32 1.0, %v318
    %v321 = vrot.slane %v319, 1
    %vm323 = vcmask 1040384
    %v324 = vsel %vm323, %v321, %v318
    %vm325 = vcmask 58368
    %326 = vst.msk [vmem:[#allocation2] sm:$0x3] %vm325, %v324
    // Predicated region
    $region30: #{tpu_custom_call.1} parent=1 // pred_check
      _
    $region31: #{tpu_custom_call.1} parent=1 // pred_check_branch
      %328 = sbr.rel (0) target = $region33
    $region32: #{tpu_custom_call.1} parent=1 // pred_region
      %s330 = ssub.s32 32, 32
      %331 = vsyncadd [#allocation3], %s330
      %s333 = sshll.u32 [#allocation2], 4
      %s334 = int_to_ptr.vmem [resolvable:$true] %s333
      %336 = dma.vmem_to_hbm [thread:$0]  %s334, 32, %s7, [#allocation3]
    $region33: #{tpu_custom_call.1} parent=1 // pred_fallthru
      _
    // Predicated region
    $region34: #{tpu_custom_call.1} parent=1 // pred_check
      _
    $region35: #{tpu_custom_call.1} parent=1 // pred_check_branch
      %338 = sbr.rel (0) target = $region37
    $region36: #{tpu_custom_call.1} parent=1 // pred_region
      %339 = dma.done [#allocation3], 32
    $region37: #{tpu_custom_call.1} parent=1 // pred_fallthru
      _
    %340 = vsyncpa [#allocation3], 1

</llo_original>
